<compile_context>
chip_gen: v5e
topology: v5e:2x2
jax: 0.10.0
libtpu: 0.0.40
codegen_flags: <defaults>
</compile_context>

<pallas_src>
import jax
import jax.numpy as jnp
from jax.experimental import pallas as pl
from jax.experimental.pallas import tpu as pltpu


def stroke_net_kernel(
    x_ids_ref, mask_ref, sids_ref, smask_ref,
    emb_ref, semb_ref,
    mwx_ref, mws_ref, mb_ref,
    w1_ref, b1_ref, w2_ref, b2_ref, w3_ref, b3_ref,
    out_ref,
):
    f32 = jnp.float32
    bf16 = jnp.bfloat16

    TB, S = x_ids_ref.shape
    V = emb_ref.shape[0]
    Vs = semb_ref.shape[0]
    SG = sids_ref.shape[1]

    # ---- word path: mask folded into one-hot -> per-batch vocab counts ----
    ids = x_ids_ref[...]                                        # (TB, S) int32
    mask = mask_ref[...]                                        # (TB, S) f32
    viota = jax.lax.broadcasted_iota(jnp.int32, (TB, S, V), 2)  # (TB, S, V)
    m_onehot = jnp.where(viota == ids[..., None], mask[..., None], 0.0)
    counts = jnp.sum(m_onehot, axis=1)                          # (TB, V) f32, exact ints
    pooled_num = jnp.dot(counts.astype(bf16), emb_ref[...],
                         preferred_element_type=f32)            # (TB, E)
    inv_den = pl.reciprocal(
        jnp.maximum(jnp.sum(mask, axis=1, keepdims=True), 1e-6), approx=True)
    pooled = pooled_num * inv_den                               # (TB, E)

    # ---- stroke path: same trick over (S*G, Vs) ----
    sids = sids_ref[...]                                        # (TB, S*G)
    smask = smask_ref[...]                                      # (TB, S*G)
    siota = jax.lax.broadcasted_iota(jnp.int32, (TB, SG, Vs), 2)
    s_onehot = jnp.where(siota == sids[..., None], smask[..., None], 0.0)
    scounts = jnp.sum(s_onehot, axis=1)                         # (TB, Vs)
    s_num = jnp.dot(scounts.astype(bf16), semb_ref[...],
                    preferred_element_type=f32)                 # (TB, E)
    s_inv = pl.reciprocal(
        jnp.maximum(jnp.sum(smask, axis=1, keepdims=True), 1e-6), approx=True)
    s_pooled = s_num * s_inv                                    # (TB, E)

    # ---- merge linear: split-weight matmuls instead of lane-axis concat ----
    h = (jnp.dot(pooled.astype(bf16), mwx_ref[...], preferred_element_type=f32)
         + jnp.dot(s_pooled.astype(bf16), mws_ref[...], preferred_element_type=f32)
         + mb_ref[...])                                         # (TB, E)

    # ---- output MLP: Linear -> ReLU -> Linear -> ReLU -> Linear ----
    h1 = jnp.maximum(
        jnp.dot(h.astype(bf16), w1_ref[...], preferred_element_type=f32)
        + b1_ref[...], 0.0)
    h2 = jnp.maximum(
        jnp.dot(h1.astype(bf16), w2_ref[...], preferred_element_type=f32)
        + b2_ref[...], 0.0)
    out_ref[...] = (
        jnp.dot(h2.astype(bf16), w3_ref[...], preferred_element_type=f32)
        + b3_ref[...]
    ).astype(out_ref.dtype)


def stroke_net_forward(x_ids, mask, stroke_ids, stroke_mask, params, *,
                       batch_tile=256):
    B, S = x_ids.shape
    G = stroke_ids.shape[2]
    V, E = params["emb"].shape
    Vs = params["stroke_emb"].shape[0]
    H2 = params["w1"].shape[1]
    H = params["w2"].shape[1]
    num_classes = params["w3"].shape[1]

    # lane-dense output: pad class dim to a multiple of 128
    out_pad = ((num_classes + 127) // 128) * 128

    # batch tile (multiple of 8 sublanes), pad batch to a multiple of it
    tb = min(batch_tile, ((B + 7) // 8) * 8)
    tb = ((tb + 7) // 8) * 8
    B_pad = ((B + tb - 1) // tb) * tb
    pad_b = B_pad - B

    f32, bf16 = jnp.float32, jnp.bfloat16
    x_ids_p = jnp.pad(x_ids.astype(jnp.int32), ((0, pad_b), (0, 0)))
    mask_p = jnp.pad(mask.astype(f32), ((0, pad_b), (0, 0)))
    sids_p = jnp.pad(stroke_ids.astype(jnp.int32).reshape(B, S * G),
                     ((0, pad_b), (0, 0)))
    smask_p = jnp.pad(stroke_mask.astype(f32).reshape(B, S * G),
                      ((0, pad_b), (0, 0)))

    # weights: bf16 for MXU inputs, biases stay f32 (added post-accumulation)
    emb = params["emb"].astype(bf16)
    semb = params["stroke_emb"].astype(bf16)
    mwx = params["mw"][:E].astype(bf16)          # (E, E)
    mws = params["mw"][E:].astype(bf16)          # (E, E)
    mb = params["mb"].reshape(1, E).astype(f32)
    w1 = params["w1"].astype(bf16)
    b1 = params["b1"].reshape(1, H2).astype(f32)
    w2 = params["w2"].astype(bf16)
    b2 = params["b2"].reshape(1, H).astype(f32)
    w3 = jnp.pad(params["w3"], ((0, 0), (0, out_pad - num_classes))).astype(bf16)
    b3 = jnp.pad(params["b3"].reshape(1, num_classes),
                 ((0, 0), (0, out_pad - num_classes))).astype(f32)

    def batch_spec(shape):
        return pl.BlockSpec(shape, lambda b: (b, 0))

    def const_spec(shape):
        return pl.BlockSpec(shape, lambda b: (0, 0))   # VMEM-resident across steps

    in_specs = [
        batch_spec((tb, S)),            # x_ids
        batch_spec((tb, S)),            # mask
        batch_spec((tb, S * G)),        # stroke ids (flattened)
        batch_spec((tb, S * G)),        # stroke mask (flattened)
        const_spec((V, E)),             # emb
        const_spec((Vs, E)),            # stroke_emb
        const_spec((E, E)),             # mw[:E]
        const_spec((E, E)),             # mw[E:]
        const_spec((1, E)),             # mb
        const_spec((E, H2)),            # w1
        const_spec((1, H2)),            # b1
        const_spec((H2, H)),            # w2
        const_spec((1, H)),             # b2
        const_spec((H, out_pad)),       # w3 (class-padded)
        const_spec((1, out_pad)),       # b3 (class-padded)
    ]
    out_specs = pl.BlockSpec((tb, out_pad), lambda b: (b, 0))

    out_padded = pl.pallas_call(
        stroke_net_kernel,
        out_shape=jax.ShapeDtypeStruct((B_pad, out_pad), jnp.float32),
        grid=(B_pad // tb,),
        in_specs=in_specs,
        out_specs=out_specs,
        compiler_params=pltpu.CompilerParams(
            dimension_semantics=("parallel",)),
    )(x_ids_p, mask_p, sids_p, smask_p, emb, semb, mwx, mws, mb,
      w1, b1, w2, b2, w3, b3)

    return out_padded[:B, :num_classes]


def _reference_forward(x_ids, mask, stroke_ids, stroke_mask, params):
    # pure-JAX f32 reference mirroring the PyTorch module
    x = params["emb"][x_ids]                                            # (B, S, E)
    m = mask.astype(x.dtype)
    x = jnp.sum(x * m[..., None], axis=1) / jnp.sum(m, axis=1, keepdims=True)
    xs = params["stroke_emb"][stroke_ids]                               # (B, S, G, E)
    sm = stroke_mask.astype(xs.dtype)[..., None]                        # (B, S, G, 1)
    xs = (xs * sm).sum(-2).sum(-2) / sm.sum(-2).sum(-2)
    h = jnp.concatenate([x, xs], axis=1)
    h = h @ params["mw"] + params["mb"]
    h = jnp.maximum(h @ params["w1"] + params["b1"], 0.0)
    h = jnp.maximum(h @ params["w2"] + params["b2"], 0.0)
    return h @ params["w3"] + params["b3"]


if __name__ == "__main__":
    # small, forward-consistent shapes
    vocab_size = 64
    stroke_n_gram_counts = 128
    emb_size = 32
    hidden_size = 32
    num_classes = 8
    B, S, G = 2, 8, 4

    key = jax.random.PRNGKey(0)
    ks = jax.random.split(key, 12)

    params = {
        "emb":        jax.random.normal(ks[0], (vocab_size, emb_size), jnp.float32),
        "stroke_emb": jax.random.normal(ks[1], (stroke_n_gram_counts, emb_size), jnp.float32),
        "mw": 0.1 * jax.random.normal(ks[2], (2 * emb_size, emb_size), jnp.float32),
        "mb": 0.1 * jax.random.normal(ks[3], (1, emb_size), jnp.float32),
        "w1": 0.1 * jax.random.normal(ks[4], (emb_size, hidden_size * 2), jnp.float32),
        "b1": 0.1 * jax.random.normal(ks[5], (1, hidden_size * 2), jnp.float32),
        "w2": 0.1 * jax.random.normal(ks[6], (hidden_size * 2, hidden_size), jnp.float32),
        "b2": 0.1 * jax.random.normal(ks[7], (1, hidden_size), jnp.float32),
        "w3": 0.1 * jax.random.normal(ks[8], (hidden_size, num_classes), jnp.float32),
        "b3": 0.1 * jax.random.normal(ks[9], (1, num_classes), jnp.float32),
    }

    x_ids = jax.random.randint(ks[10], (B, S), 0, vocab_size, jnp.int32)
    stroke_ids = jax.random.randint(ks[11], (B, S, G), 0, stroke_n_gram_counts, jnp.int32)
    # masks: first token / first n-gram always valid to avoid div-by-zero rows
    mask = (jax.random.uniform(ks[10], (B, S)) > 0.3).astype(jnp.float32)
    mask = mask.at[:, 0].set(1.0)
    stroke_mask = (jax.random.uniform(ks[11], (B, S, G)) > 0.3).astype(jnp.float32)
    stroke_mask = stroke_mask.at[:, :, 0].set(1.0)

    out = stroke_net_forward(x_ids, mask, stroke_ids, stroke_mask, params)
    jax.block_until_ready(out)

    ref = _reference_forward(x_ids, mask, stroke_ids, stroke_mask, params)
    assert out.shape == (B, num_classes)
    # bf16 MXU inputs + approx reciprocal => slightly looser tolerance than f32
    assert jnp.allclose(out, ref, atol=2e-2, rtol=2e-2), "kernel mismatch vs reference"

    print("KERNEL_OK")
</pallas_src>

<mosaic_0001>
module attributes {stable_mosaic.version = 11 : i64} {
  func.func @stroke_net_kernel(%arg0: i32, %arg1: memref<8x8xi32, #tpu.memory_space<vmem>>, %arg2: memref<8x8xf32, #tpu.memory_space<vmem>>, %arg3: memref<8x32xi32, #tpu.memory_space<vmem>>, %arg4: memref<8x32xf32, #tpu.memory_space<vmem>>, %arg5: memref<64x32xbf16, #tpu.memory_space<vmem>>, %arg6: memref<128x32xbf16, #tpu.memory_space<vmem>>, %arg7: memref<32x32xbf16, #tpu.memory_space<vmem>>, %arg8: memref<32x32xbf16, #tpu.memory_space<vmem>>, %arg9: memref<1x32xf32, #tpu.memory_space<vmem>>, %arg10: memref<32x64xbf16, #tpu.memory_space<vmem>>, %arg11: memref<1x64xf32, #tpu.memory_space<vmem>>, %arg12: memref<64x32xbf16, #tpu.memory_space<vmem>>, %arg13: memref<1x32xf32, #tpu.memory_space<vmem>>, %arg14: memref<32x128xbf16, #tpu.memory_space<vmem>>, %arg15: memref<1x128xf32, #tpu.memory_space<vmem>>, %arg16: memref<8x128xf32, #tpu.memory_space<vmem>>) attributes {dimension_semantics = [#tpu.dimension_semantics<parallel>], iteration_bounds = array<i64: 1>, scalar_prefetch = 0 : i64, scratch_operands = 0 : i64, tpu.core_type = #tpu.core_type<tc>, window_params = [{transform_indices = @transform_0, window_bounds = array<i64: 8, 8>}, {transform_indices = @transform_1, window_bounds = array<i64: 8, 8>}, {transform_indices = @transform_2, window_bounds = array<i64: 8, 32>}, {transform_indices = @transform_3, window_bounds = array<i64: 8, 32>}, {pipeline_mode = #tpu.pipeline_mode<synchronous>, transform_indices = @transform_4, window_bounds = array<i64: 64, 32>}, {pipeline_mode = #tpu.pipeline_mode<synchronous>, transform_indices = @transform_5, window_bounds = array<i64: 128, 32>}, {pipeline_mode = #tpu.pipeline_mode<synchronous>, transform_indices = @transform_6, window_bounds = array<i64: 32, 32>}, {pipeline_mode = #tpu.pipeline_mode<synchronous>, transform_indices = @transform_7, window_bounds = array<i64: 32, 32>}, {pipeline_mode = #tpu.pipeline_mode<synchronous>, transform_indices = @transform_8, window_bounds = array<i64: 1, 32>}, {pipeline_mode = #tpu.pipeline_mode<synchronous>, transform_indices = @transform_9, window_bounds = array<i64: 32, 64>}, {pipeline_mode = #tpu.pipeline_mode<synchronous>, transform_indices = @transform_10, window_bounds = array<i64: 1, 64>}, {pipeline_mode = #tpu.pipeline_mode<synchronous>, transform_indices = @transform_11, window_bounds = array<i64: 64, 32>}, {pipeline_mode = #tpu.pipeline_mode<synchronous>, transform_indices = @transform_12, window_bounds = array<i64: 1, 32>}, {pipeline_mode = #tpu.pipeline_mode<synchronous>, transform_indices = @transform_13, window_bounds = array<i64: 32, 128>}, {pipeline_mode = #tpu.pipeline_mode<synchronous>, transform_indices = @transform_14, window_bounds = array<i64: 1, 128>}, {transform_indices = @transform_15, window_bounds = array<i64: 8, 128>}]} {
    %c0 = arith.constant 0 : index
    %c0_0 = arith.constant 0 : index
    %0 = vector.load %arg1[%c0, %c0_0] : memref<8x8xi32, #tpu.memory_space<vmem>>, vector<8x8xi32>
    %c0_1 = arith.constant 0 : index
    %c0_2 = arith.constant 0 : index
    %1 = vector.load %arg2[%c0_1, %c0_2] : memref<8x8xf32, #tpu.memory_space<vmem>>, vector<8x8xf32>
    %2 = tpu.iota {dimensions = array<i32: 2>} : vector<8x8x64xi32>
    %3 = vector.shape_cast %0 : vector<8x8xi32> to vector<8x8x1xi32>
    %4 = vector.broadcast %3 : vector<8x8x1xi32> to vector<8x8x64xi32>
    %5 = arith.cmpi eq, %2, %4 : vector<8x8x64xi32>
    %6 = vector.shape_cast %1 : vector<8x8xf32> to vector<8x8x1xf32>
    %cst = arith.constant 0.000000e+00 : f32
    %7 = vector.shape_cast %6 : vector<8x8x1xf32> to vector<8x8x1xf32>
    %8 = vector.broadcast %7 : vector<8x8x1xf32> to vector<8x8x64xf32>
    %9 = vector.broadcast %cst : f32 to vector<8x8x64xf32>
    %10 = arith.select %5, %8, %9 : vector<8x8x64xi1>, vector<8x8x64xf32>
    %cst_3 = arith.constant dense<0.000000e+00> : vector<8x64xf32>
    %11 = vector.multi_reduction <add>, %10, %cst_3 [1] : vector<8x8x64xf32> to vector<8x64xf32>
    %12 = arith.truncf %11 : vector<8x64xf32> to vector<8x64xbf16>
    %c0_4 = arith.constant 0 : index
    %c0_5 = arith.constant 0 : index
    %13 = vector.load %arg5[%c0_4, %c0_5] : memref<64x32xbf16, #tpu.memory_space<vmem>>, vector<64x32xbf16>
    %cst_6 = arith.constant dense<0.000000e+00> : vector<8x32xf32>
    %14 = tpu.matmul %12, %13, %cst_6 {dimension_numbers = #tpu.dot_dimension_numbers<[1], [0], [0], [1], [0, 0, 1, 1], [], []>} : vector<8x64xbf16>, vector<64x32xbf16>, vector<8x32xf32> -> vector<8x32xf32>
    %cst_7 = arith.constant dense<0.000000e+00> : vector<8xf32>
    %15 = vector.multi_reduction <add>, %1, %cst_7 [1] : vector<8x8xf32> to vector<8xf32>
    %16 = vector.shape_cast %15 : vector<8xf32> to vector<8x1xf32>
    %cst_8 = arith.constant 9.99999997E-7 : f32
    %17 = vector.broadcast %cst_8 : f32 to vector<8x1xf32>
    %18 = arith.maximumf %16, %17 : vector<8x1xf32>
    %19 = tpu.reciprocal %18 {approx = true} : vector<8x1xf32> -> vector<8x1xf32>
    %20 = vector.broadcast %19 : vector<8x1xf32> to vector<8x32xf32>
    %21 = arith.mulf %14, %20 : vector<8x32xf32>
    %c0_9 = arith.constant 0 : index
    %c0_10 = arith.constant 0 : index
    %22 = vector.load %arg3[%c0_9, %c0_10] : memref<8x32xi32, #tpu.memory_space<vmem>>, vector<8x32xi32>
    %c0_11 = arith.constant 0 : index
    %c0_12 = arith.constant 0 : index
    %23 = vector.load %arg4[%c0_11, %c0_12] : memref<8x32xf32, #tpu.memory_space<vmem>>, vector<8x32xf32>
    %24 = tpu.iota {dimensions = array<i32: 2>} : vector<8x32x128xi32>
    %25 = vector.shape_cast %22 : vector<8x32xi32> to vector<8x32x1xi32>
    %26 = vector.broadcast %25 : vector<8x32x1xi32> to vector<8x32x128xi32>
    %27 = arith.cmpi eq, %24, %26 : vector<8x32x128xi32>
    %28 = vector.shape_cast %23 : vector<8x32xf32> to vector<8x32x1xf32>
    %cst_13 = arith.constant 0.000000e+00 : f32
    %29 = vector.shape_cast %28 : vector<8x32x1xf32> to vector<8x32x1xf32>
    %30 = vector.broadcast %29 : vector<8x32x1xf32> to vector<8x32x128xf32>
    %31 = vector.broadcast %cst_13 : f32 to vector<8x32x128xf32>
    %32 = arith.select %27, %30, %31 : vector<8x32x128xi1>, vector<8x32x128xf32>
    %cst_14 = arith.constant dense<0.000000e+00> : vector<8x128xf32>
    %33 = vector.multi_reduction <add>, %32, %cst_14 [1] : vector<8x32x128xf32> to vector<8x128xf32>
    %34 = arith.truncf %33 : vector<8x128xf32> to vector<8x128xbf16>
    %c0_15 = arith.constant 0 : index
    %c0_16 = arith.constant 0 : index
    %35 = vector.load %arg6[%c0_15, %c0_16] : memref<128x32xbf16, #tpu.memory_space<vmem>>, vector<128x32xbf16>
    %cst_17 = arith.constant dense<0.000000e+00> : vector<8x32xf32>
    %36 = tpu.matmul %34, %35, %cst_17 {dimension_numbers = #tpu.dot_dimension_numbers<[1], [0], [0], [1], [0, 0, 1, 1], [], []>} : vector<8x128xbf16>, vector<128x32xbf16>, vector<8x32xf32> -> vector<8x32xf32>
    %cst_18 = arith.constant dense<0.000000e+00> : vector<8xf32>
    %37 = vector.multi_reduction <add>, %23, %cst_18 [1] : vector<8x32xf32> to vector<8xf32>
    %38 = vector.shape_cast %37 : vector<8xf32> to vector<8x1xf32>
    %cst_19 = arith.constant 9.99999997E-7 : f32
    %39 = vector.broadcast %cst_19 : f32 to vector<8x1xf32>
    %40 = arith.maximumf %38, %39 : vector<8x1xf32>
    %41 = tpu.reciprocal %40 {approx = true} : vector<8x1xf32> -> vector<8x1xf32>
    %42 = vector.broadcast %41 : vector<8x1xf32> to vector<8x32xf32>
    %43 = arith.mulf %36, %42 : vector<8x32xf32>
    %44 = arith.truncf %21 : vector<8x32xf32> to vector<8x32xbf16>
    %c0_20 = arith.constant 0 : index
    %c0_21 = arith.constant 0 : index
    %45 = vector.load %arg7[%c0_20, %c0_21] : memref<32x32xbf16, #tpu.memory_space<vmem>>, vector<32x32xbf16>
    %cst_22 = arith.constant dense<0.000000e+00> : vector<8x32xf32>
    %46 = tpu.matmul %44, %45, %cst_22 {dimension_numbers = #tpu.dot_dimension_numbers<[1], [0], [0], [1], [0, 0, 1, 1], [], []>} : vector<8x32xbf16>, vector<32x32xbf16>, vector<8x32xf32> -> vector<8x32xf32>
    %47 = arith.truncf %43 : vector<8x32xf32> to vector<8x32xbf16>
    %c0_23 = arith.constant 0 : index
    %c0_24 = arith.constant 0 : index
    %48 = vector.load %arg8[%c0_23, %c0_24] : memref<32x32xbf16, #tpu.memory_space<vmem>>, vector<32x32xbf16>
    %cst_25 = arith.constant dense<0.000000e+00> : vector<8x32xf32>
    %49 = tpu.matmul %47, %48, %cst_25 {dimension_numbers = #tpu.dot_dimension_numbers<[1], [0], [0], [1], [0, 0, 1, 1], [], []>} : vector<8x32xbf16>, vector<32x32xbf16>, vector<8x32xf32> -> vector<8x32xf32>
    %50 = arith.addf %46, %49 : vector<8x32xf32>
    %c0_26 = arith.constant 0 : index
    %c0_27 = arith.constant 0 : index
    %51 = vector.load %arg9[%c0_26, %c0_27] : memref<1x32xf32, #tpu.memory_space<vmem>>, vector<1x32xf32>
    %52 = vector.broadcast %51 : vector<1x32xf32> to vector<8x32xf32>
    %53 = arith.addf %50, %52 : vector<8x32xf32>
    %54 = arith.truncf %53 : vector<8x32xf32> to vector<8x32xbf16>
    %c0_28 = arith.constant 0 : index
    %c0_29 = arith.constant 0 : index
    %55 = vector.load %arg10[%c0_28, %c0_29] : memref<32x64xbf16, #tpu.memory_space<vmem>>, vector<32x64xbf16>
    %cst_30 = arith.constant dense<0.000000e+00> : vector<8x64xf32>
    %56 = tpu.matmul %54, %55, %cst_30 {dimension_numbers = #tpu.dot_dimension_numbers<[1], [0], [0], [1], [0, 0, 1, 1], [], []>} : vector<8x32xbf16>, vector<32x64xbf16>, vector<8x64xf32> -> vector<8x64xf32>
    %c0_31 = arith.constant 0 : index
    %c0_32 = arith.constant 0 : index
    %57 = vector.load %arg11[%c0_31, %c0_32] : memref<1x64xf32, #tpu.memory_space<vmem>>, vector<1x64xf32>
    %58 = vector.broadcast %57 : vector<1x64xf32> to vector<8x64xf32>
    %59 = arith.addf %56, %58 : vector<8x64xf32>
    %cst_33 = arith.constant 0.000000e+00 : f32
    %60 = vector.broadcast %cst_33 : f32 to vector<8x64xf32>
    %61 = arith.maximumf %59, %60 : vector<8x64xf32>
    %62 = arith.truncf %61 : vector<8x64xf32> to vector<8x64xbf16>
    %c0_34 = arith.constant 0 : index
    %c0_35 = arith.constant 0 : index
    %63 = vector.load %arg12[%c0_34, %c0_35] : memref<64x32xbf16, #tpu.memory_space<vmem>>, vector<64x32xbf16>
    %cst_36 = arith.constant dense<0.000000e+00> : vector<8x32xf32>
    %64 = tpu.matmul %62, %63, %cst_36 {dimension_numbers = #tpu.dot_dimension_numbers<[1], [0], [0], [1], [0, 0, 1, 1], [], []>} : vector<8x64xbf16>, vector<64x32xbf16>, vector<8x32xf32> -> vector<8x32xf32>
    %c0_37 = arith.constant 0 : index
    %c0_38 = arith.constant 0 : index
    %65 = vector.load %arg13[%c0_37, %c0_38] : memref<1x32xf32, #tpu.memory_space<vmem>>, vector<1x32xf32>
    %66 = vector.broadcast %65 : vector<1x32xf32> to vector<8x32xf32>
    %67 = arith.addf %64, %66 : vector<8x32xf32>
    %cst_39 = arith.constant 0.000000e+00 : f32
    %68 = vector.broadcast %cst_39 : f32 to vector<8x32xf32>
    %69 = arith.maximumf %67, %68 : vector<8x32xf32>
    %70 = arith.truncf %69 : vector<8x32xf32> to vector<8x32xbf16>
    %c0_40 = arith.constant 0 : index
    %c0_41 = arith.constant 0 : index
    %71 = vector.load %arg14[%c0_40, %c0_41] : memref<32x128xbf16, #tpu.memory_space<vmem>>, vector<32x128xbf16>
    %cst_42 = arith.constant dense<0.000000e+00> : vector<8x128xf32>
    %72 = tpu.matmul %70, %71, %cst_42 {dimension_numbers = #tpu.dot_dimension_numbers<[1], [0], [0], [1], [0, 0, 1, 1], [], []>} : vector<8x32xbf16>, vector<32x128xbf16>, vector<8x128xf32> -> vector<8x128xf32>
    %c0_43 = arith.constant 0 : index
    %c0_44 = arith.constant 0 : index
    %73 = vector.load %arg15[%c0_43, %c0_44] : memref<1x128xf32, #tpu.memory_space<vmem>>, vector<1x128xf32>
    %74 = vector.broadcast %73 : vector<1x128xf32> to vector<8x128xf32>
    %75 = arith.addf %72, %74 : vector<8x128xf32>
    %c0_45 = arith.constant 0 : index
    %c0_46 = arith.constant 0 : index
    %76 = vector.load %arg16[%c0_45, %c0_46] : memref<8x128xf32, #tpu.memory_space<vmem>>, vector<8x128xf32>
    tpu.vector_store %arg16[%c0_45, %c0_46], %75 {strides = array<i32>} : memref<8x128xf32, #tpu.memory_space<vmem>>, vector<8x128xf32>,
    return
  }
  func.func @transform_0(%arg0: i32) -> (i32, i32) {
    %c0_i32 = arith.constant 0 : i32
    %c0_i32_0 = arith.constant 0 : i32
    return %arg0, %c0_i32 : i32, i32
  }
  func.func @transform_1(%arg0: i32) -> (i32, i32) {
    %c0_i32 = arith.constant 0 : i32
    %c0_i32_0 = arith.constant 0 : i32
    return %arg0, %c0_i32 : i32, i32
  }
  func.func @transform_2(%arg0: i32) -> (i32, i32) {
    %c0_i32 = arith.constant 0 : i32
    %c0_i32_0 = arith.constant 0 : i32
    return %arg0, %c0_i32 : i32, i32
  }
  func.func @transform_3(%arg0: i32) -> (i32, i32) {
    %c0_i32 = arith.constant 0 : i32
    %c0_i32_0 = arith.constant 0 : i32
    return %arg0, %c0_i32 : i32, i32
  }
  func.func @transform_4(%arg0: i32) -> (i32, i32) {
    %c0_i32 = arith.constant 0 : i32
    %c0_i32_0 = arith.constant 0 : i32
    %c0_i32_1 = arith.constant 0 : i32
    return %c0_i32, %c0_i32_0 : i32, i32
  }
  func.func @transform_5(%arg0: i32) -> (i32, i32) {
    %c0_i32 = arith.constant 0 : i32
    %c0_i32_0 = arith.constant 0 : i32
    %c0_i32_1 = arith.constant 0 : i32
    return %c0_i32, %c0_i32_0 : i32, i32
  }
  func.func @transform_6(%arg0: i32) -> (i32, i32) {
    %c0_i32 = arith.constant 0 : i32
    %c0_i32_0 = arith.constant 0 : i32
    %c0_i32_1 = arith.constant 0 : i32
    return %c0_i32, %c0_i32_0 : i32, i32
  }
  func.func @transform_7(%arg0: i32) -> (i32, i32) {
    %c0_i32 = arith.constant 0 : i32
    %c0_i32_0 = arith.constant 0 : i32
    %c0_i32_1 = arith.constant 0 : i32
    return %c0_i32, %c0_i32_0 : i32, i32
  }
  func.func @transform_8(%arg0: i32) -> (i32, i32) {
    %c0_i32 = arith.constant 0 : i32
    %c0_i32_0 = arith.constant 0 : i32
    %c0_i32_1 = arith.constant 0 : i32
    return %c0_i32, %c0_i32_0 : i32, i32
  }
  func.func @transform_9(%arg0: i32) -> (i32, i32) {
    %c0_i32 = arith.constant 0 : i32
    %c0_i32_0 = arith.constant 0 : i32
    %c0_i32_1 = arith.constant 0 : i32
    return %c0_i32, %c0_i32_0 : i32, i32
  }
  func.func @transform_10(%arg0: i32) -> (i32, i32) {
    %c0_i32 = arith.constant 0 : i32
    %c0_i32_0 = arith.constant 0 : i32
    %c0_i32_1 = arith.constant 0 : i32
    return %c0_i32, %c0_i32_0 : i32, i32
  }
  func.func @transform_11(%arg0: i32) -> (i32, i32) {
    %c0_i32 = arith.constant 0 : i32
    %c0_i32_0 = arith.constant 0 : i32
    %c0_i32_1 = arith.constant 0 : i32
    return %c0_i32, %c0_i32_0 : i32, i32
  }
  func.func @transform_12(%arg0: i32) -> (i32, i32) {
    %c0_i32 = arith.constant 0 : i32
    %c0_i32_0 = arith.constant 0 : i32
    %c0_i32_1 = arith.constant 0 : i32
    return %c0_i32, %c0_i32_0 : i32, i32
  }
  func.func @transform_13(%arg0: i32) -> (i32, i32) {
    %c0_i32 = arith.constant 0 : i32
    %c0_i32_0 = arith.constant 0 : i32
    %c0_i32_1 = arith.constant 0 : i32
    return %c0_i32, %c0_i32_0 : i32, i32
  }
  func.func @transform_14(%arg0: i32) -> (i32, i32) {
    %c0_i32 = arith.constant 0 : i32
    %c0_i32_0 = arith.constant 0 : i32
    %c0_i32_1 = arith.constant 0 : i32
    return %c0_i32, %c0_i32_0 : i32, i32
  }
  func.func @transform_15(%arg0: i32) -> (i32, i32) {
    %c0_i32 = arith.constant 0 : i32
    %c0_i32_0 = arith.constant 0 : i32
    return %arg0, %c0_i32 : i32, i32
  }
}

</mosaic_0001>

<llo_original>
// kernel: tpu_custom_call.1
$region0: #{tpu_custom_call.1}
  #allocation0 [shape = 'u32[]', space=smem, size = 0x4, offset = 0x4, fixed_abs, tag = 'smem constant byte address 0x4 - core index']
  #allocation1 [shape = 'u32[72,128]{1,0:T(1,128)}', space=vmem, size = 0x9000, scoped, tag = 'internal scratch']
  %s0 = inlined_call_operand.vmem [shape: s32[8,8], index: 0, kind: input, shape index: {}]
  %s1 = inlined_call_operand.vmem [shape: f32[8,8], index: 1, kind: input, shape index: {}]
  %s2 = inlined_call_operand.vmem [shape: s32[8,32], index: 2, kind: input, shape index: {}]
  %s3 = inlined_call_operand.vmem [shape: f32[8,32], index: 3, kind: input, shape index: {}]
  %s4 = inlined_call_operand.vmem [shape: bf16[64,32], index: 4, kind: input, shape index: {}]
  %s5 = inlined_call_operand.vmem [shape: bf16[128,32], index: 5, kind: input, shape index: {}]
  %s6 = inlined_call_operand.vmem [shape: bf16[32,32], index: 6, kind: input, shape index: {}]
  %s7 = inlined_call_operand.vmem [shape: bf16[32,32], index: 7, kind: input, shape index: {}]
  %s8 = inlined_call_operand.vmem [shape: f32[1,32], index: 8, kind: input, shape index: {}]
  %s9 = inlined_call_operand.vmem [shape: bf16[32,64], index: 9, kind: input, shape index: {}]
  %s10 = inlined_call_operand.vmem [shape: f32[1,64], index: 10, kind: input, shape index: {}]
  %s11 = inlined_call_operand.vmem [shape: bf16[64,32], index: 11, kind: input, shape index: {}]
  %s12 = inlined_call_operand.vmem [shape: f32[1,32], index: 12, kind: input, shape index: {}]
  %s13 = inlined_call_operand.vmem [shape: bf16[32,128], index: 13, kind: input, shape index: {}]
  %s14 = inlined_call_operand.vmem [shape: f32[1,128], index: 14, kind: input, shape index: {}]
  %s15 = inlined_call_operand.hbm [shape: f32[8,128], index: 15, kind: output, shape index: {}]
  %s16 = sld [smem:[#allocation0]]
  $region70: #{tpu_custom_call.1} parent=0
    _
  %s18 = ssub.s32 1, %s16
  %s19 = scalar_select 0, %s18, %s16
  $region1: #{tpu_custom_call.1} parent=0
    #allocation2 [shape = 'u8[4096]{0}', space=vmem, size = 0x1000, scoped, tag = 'output window, operand 0, single buffered']
    #allocation3 [shape = 's32[1]{0}', space=sflag, size = 0x4, scoped, tag = 'scoped memory for tpu_custom_call.1']
    %20 = vsyncpa [#allocation3], 0
    // Predicated region
    $region2: #{tpu_custom_call.1} parent=1 // pred_check
      _
    $region3: #{tpu_custom_call.1} parent=1 // pred_check_branch
      %22 = sbr.rel (0) target = $region5
    $region4: #{tpu_custom_call.1} parent=1 // pred_region
      _
    $region5: #{tpu_custom_call.1} parent=1 // pred_fallthru
      _
    // Predicated region
    $region6: #{tpu_custom_call.1} parent=1 // pred_check
      _
    $region7: #{tpu_custom_call.1} parent=1 // pred_check_branch
      %24 = sbr.rel (0) target = $region9
    $region8: #{tpu_custom_call.1} parent=1 // pred_region
      _
    $region9: #{tpu_custom_call.1} parent=1 // pred_fallthru
      _
    // Predicated region
    $region10: #{tpu_custom_call.1} parent=1 // pred_check
      _
    $region11: #{tpu_custom_call.1} parent=1 // pred_check_branch
      %26 = sbr.rel (0) target = $region13
    $region12: #{tpu_custom_call.1} parent=1 // pred_region
      _
    $region13: #{tpu_custom_call.1} parent=1 // pred_fallthru
      _
    // Predicated region
    $region14: #{tpu_custom_call.1} parent=1 // pred_check
      _
    $region15: #{tpu_custom_call.1} parent=1 // pred_check_branch
      %28 = sbr.rel (0) target = $region17
    $region16: #{tpu_custom_call.1} parent=1 // pred_region
      _
    $region17: #{tpu_custom_call.1} parent=1 // pred_fallthru
      _
    // Predicated region
    $region18: #{tpu_custom_call.1} parent=1 // pred_check
      _
    $region19: #{tpu_custom_call.1} parent=1 // pred_check_branch
      %30 = sbr.rel (0) target = $region21
    $region20: #{tpu_custom_call.1} parent=1 // pred_region
      _
    $region21: #{tpu_custom_call.1} parent=1 // pred_fallthru
      _
    // Predicated region
    $region22: #{tpu_custom_call.1} parent=1 // pred_check
      _
    $region23: #{tpu_custom_call.1} parent=1 // pred_check_branch
      %32 = sbr.rel (0) target = $region25
    $region24: #{tpu_custom_call.1} parent=1 // pred_region
      _
    $region25: #{tpu_custom_call.1} parent=1 // pred_fallthru
      _
    // Predicated region
    $region26: #{tpu_custom_call.1} parent=1 // pred_check
      _
    $region27: #{tpu_custom_call.1} parent=1 // pred_check_branch
      %34 = sbr.rel (0) target = $region29
    $region28: #{tpu_custom_call.1} parent=1 // pred_region
      _
    $region29: #{tpu_custom_call.1} parent=1 // pred_fallthru
      _
    // Predicated region
    $region30: #{tpu_custom_call.1} parent=1 // pred_check
      _
    $region31: #{tpu_custom_call.1} parent=1 // pred_check_branch
      %36 = sbr.rel (0) target = $region33
    $region32: #{tpu_custom_call.1} parent=1 // pred_region
      _
    $region33: #{tpu_custom_call.1} parent=1 // pred_fallthru
      _
    // Predicated region
    $region34: #{tpu_custom_call.1} parent=1 // pred_check
      _
    $region35: #{tpu_custom_call.1} parent=1 // pred_check_branch
      %38 = sbr.rel (0) target = $region37
    $region36: #{tpu_custom_call.1} parent=1 // pred_region
      _
    $region37: #{tpu_custom_call.1} parent=1 // pred_fallthru
      _
    // Predicated region
    $region38: #{tpu_custom_call.1} parent=1 // pred_check
      _
    $region39: #{tpu_custom_call.1} parent=1 // pred_check_branch
      %40 = sbr.rel (0) target = $region41
    $region40: #{tpu_custom_call.1} parent=1 // pred_region
      _
    $region41: #{tpu_custom_call.1} parent=1 // pred_fallthru
      _
    // Predicated region
    $region42: #{tpu_custom_call.1} parent=1 // pred_check
      _
    $region43: #{tpu_custom_call.1} parent=1 // pred_check_branch
      %42 = sbr.rel (0) target = $region45
    $region44: #{tpu_custom_call.1} parent=1 // pred_region
      _
    $region45: #{tpu_custom_call.1} parent=1 // pred_fallthru
      _
    // Predicated region
    $region46: #{tpu_custom_call.1} parent=1 // pred_check
      _
    $region47: #{tpu_custom_call.1} parent=1 // pred_check_branch
      %44 = sbr.rel (0) target = $region49
    $region48: #{tpu_custom_call.1} parent=1 // pred_region
      _
    $region49: #{tpu_custom_call.1} parent=1 // pred_fallthru
      _
    // Predicated region
    $region50: #{tpu_custom_call.1} parent=1 // pred_check
      _
    $region51: #{tpu_custom_call.1} parent=1 // pred_check_branch
      %46 = sbr.rel (0) target = $region53
    $region52: #{tpu_custom_call.1} parent=1 // pred_region
      _
    $region53: #{tpu_custom_call.1} parent=1 // pred_fallthru
      _
    // Predicated region
    $region54: #{tpu_custom_call.1} parent=1 // pred_check
      _
    $region55: #{tpu_custom_call.1} parent=1 // pred_check_branch
      %48 = sbr.rel (0) target = $region57
    $region56: #{tpu_custom_call.1} parent=1 // pred_region
      _
    $region57: #{tpu_custom_call.1} parent=1 // pred_fallthru
      _
    // Predicated region
    $region58: #{tpu_custom_call.1} parent=1 // pred_check
      _
    $region59: #{tpu_custom_call.1} parent=1 // pred_check_branch
      %50 = sbr.rel (0) target = $region61
    $region60: #{tpu_custom_call.1} parent=1 // pred_region
      _
    $region61: #{tpu_custom_call.1} parent=1 // pred_fallthru
      _
    %v52 = vld [vmem:[%s0] sm:$0xff]
    %v53 = vld [vmem:[%s1] sm:$0xff]
    %v54 = vlaneseq
    %v55 = vand.u32 %v54, 127
    %v56 = vperm.slane %v52, 0
    %v57 = vlaneseq
    %v58 = vshrl.u32 %v57, 7
    %60 = vset.pattern.permute.xlu0 %v58
    %61 = vperm.xlu0 %60, %v56
    %v62 = vpop.permute.xlu0 %61
    %v63 = vperm.slane %v52, 1
    %v64 = vlaneseq
    %v65 = vshrl.u32 %v64, 7
    %67 = vset.pattern.permute.xlu0 %v65
    %68 = vperm.xlu0 %67, %v63
    %v69 = vpop.permute.xlu0 %68
    %v70 = vperm.slane %v52, 2
    %v71 = vlaneseq
    %v72 = vshrl.u32 %v71, 7
    %74 = vset.pattern.permute.xlu0 %v72
    %75 = vperm.xlu0 %74, %v70
    %v76 = vpop.permute.xlu0 %75
    %v77 = vperm.slane %v52, 3
    %v78 = vlaneseq
    %v79 = vshrl.u32 %v78, 7
    %81 = vset.pattern.permute.xlu0 %v79
    %82 = vperm.xlu0 %81, %v77
    %v83 = vpop.permute.xlu0 %82
    %v84 = vperm.slane %v52, 4
    %v85 = vlaneseq
    %v86 = vshrl.u32 %v85, 7
    %88 = vset.pattern.permute.xlu0 %v86
    %89 = vperm.xlu0 %88, %v84
    %v90 = vpop.permute.xlu0 %89
    %v91 = vperm.slane %v52, 5
    %v92 = vlaneseq
    %v93 = vshrl.u32 %v92, 7
    %95 = vset.pattern.permute.xlu0 %v93
    %96 = vperm.xlu0 %95, %v91
    %v97 = vpop.permute.xlu0 %96
    %v98 = vperm.slane %v52, 6
    %v99 = vlaneseq
    %v100 = vshrl.u32 %v99, 7
    %102 = vset.pattern.permute.xlu0 %v100
    %103 = vperm.xlu0 %102, %v98
    %v104 = vpop.permute.xlu0 %103
    %v105 = vperm.slane %v52, 7
    %v106 = vlaneseq
    %v107 = vshrl.u32 %v106, 7
    %109 = vset.pattern.permute.xlu0 %v107
    %110 = vperm.xlu0 %109, %v105
    %v111 = vpop.permute.xlu0 %110
    %vm112 = vcmp.eq.s32.totalorder %v55, %v62
    %vm113 = vcmp.eq.s32.totalorder %v55, %v69
    %vm114 = vcmp.eq.s32.totalorder %v55, %v76
    %vm115 = vcmp.eq.s32.totalorder %v55, %v83
    %vm116 = vcmp.eq.s32.totalorder %v55, %v90
    %vm117 = vcmp.eq.s32.totalorder %v55, %v97
    %vm118 = vcmp.eq.s32.totalorder %v55, %v104
    %vm119 = vcmp.eq.s32.totalorder %v55, %v111
    %v120 = vperm.slane %v53, 0
    %v121 = vlaneseq
    %v122 = vshrl.u32 %v121, 7
    %124 = vset.pattern.permute.xlu0 %v122
    %125 = vperm.xlu0 %124, %v120
    %v126 = vpop.permute.xlu0 %125
    %v127 = vperm.slane %v53, 1
    %v128 = vlaneseq
    %v129 = vshrl.u32 %v128, 7
    %131 = vset.pattern.permute.xlu0 %v129
    %132 = vperm.xlu0 %131, %v127
    %v133 = vpop.permute.xlu0 %132
    %v134 = vperm.slane %v53, 2
    %v135 = vlaneseq
    %v136 = vshrl.u32 %v135, 7
    %138 = vset.pattern.permute.xlu0 %v136
    %139 = vperm.xlu0 %138, %v134
    %v140 = vpop.permute.xlu0 %139
    %v141 = vperm.slane %v53, 3
    %v142 = vlaneseq
    %v143 = vshrl.u32 %v142, 7
    %145 = vset.pattern.permute.xlu0 %v143
    %146 = vperm.xlu0 %145, %v141
    %v147 = vpop.permute.xlu0 %146
    %v148 = vperm.slane %v53, 4
    %v149 = vlaneseq
    %v150 = vshrl.u32 %v149, 7
    %152 = vset.pattern.permute.xlu0 %v150
    %153 = vperm.xlu0 %152, %v148
    %v154 = vpop.permute.xlu0 %153
    %v155 = vperm.slane %v53, 5
    %v156 = vlaneseq
    %v157 = vshrl.u32 %v156, 7
    %159 = vset.pattern.permute.xlu0 %v157
    %160 = vperm.xlu0 %159, %v155
    %v161 = vpop.permute.xlu0 %160
    %v162 = vperm.slane %v53, 6
    %v163 = vlaneseq
    %v164 = vshrl.u32 %v163, 7
    %166 = vset.pattern.permute.xlu0 %v164
    %167 = vperm.xlu0 %166, %v162
    %v168 = vpop.permute.xlu0 %167
    %v169 = vperm.slane %v53, 7
    %v170 = vlaneseq
    %v171 = vshrl.u32 %v170, 7
    %173 = vset.pattern.permute.xlu0 %v171
    %174 = vperm.xlu0 %173, %v169
    %v175 = vpop.permute.xlu0 %174
    %v176 = vsel %vm112, %v126, 0.0
    %v177 = vsel %vm113, %v133, 0.0
    %v178 = vsel %vm114, %v140, 0.0
    %v179 = vsel %vm115, %v147, 0.0
    %v180 = vsel %vm116, %v154, 0.0
    %v181 = vsel %vm117, %v161, 0.0
    %v182 = vsel %vm118, %v168, 0.0
    %v183 = vsel %vm119, %v175, 0.0
    %vm184 = vcmask 523264
    %v185 = vsel %vm184, %v176, 0.0
    %v186 = vrot.slane %v185, 4
    %v187 = vadd.f32 %v185, %v186
    %v188 = vrot.slane %v187, 2
    %v189 = vadd.f32 %v187, %v188
    %v190 = vrot.slane %v189, 1
    %v191 = vadd.f32 %v189, %v190
    %v192 = vsel %vm184, %v177, 0.0
    %v193 = vrot.slane %v192, 4
    %v194 = vadd.f32 %v192, %v193
    %v195 = vrot.slane %v194, 2
    %v196 = vadd.f32 %v194, %v195
    %v197 = vrot.slane %v196, 1
    %v198 = vadd.f32 %v196, %v197
    %v199 = vsel %vm184, %v178, 0.0
    %v200 = vrot.slane %v199, 4
    %v201 = vadd.f32 %v199, %v200
    %v202 = vrot.slane %v201, 2
    %v203 = vadd.f32 %v201, %v202
    %v204 = vrot.slane %v203, 1
    %v205 = vadd.f32 %v203, %v204
    %v206 = vsel %vm184, %v179, 0.0
    %v207 = vrot.slane %v206, 4
    %v208 = vadd.f32 %v206, %v207
    %v209 = vrot.slane %v208, 2
    %v210 = vadd.f32 %v208, %v209
    %v211 = vrot.slane %v210, 1
    %v212 = vadd.f32 %v210, %v211
    %v213 = vsel %vm184, %v180, 0.0
    %v214 = vrot.slane %v213, 4
    %v215 = vadd.f32 %v213, %v214
    %v216 = vrot.slane %v215, 2
    %v217 = vadd.f32 %v215, %v216
    %v218 = vrot.slane %v217, 1
    %v219 = vadd.f32 %v217, %v218
    %v220 = vsel %vm184, %v181, 0.0
    %v221 = vrot.slane %v220, 4
    %v222 = vadd.f32 %v220, %v221
    %v223 = vrot.slane %v222, 2
    %v224 = vadd.f32 %v222, %v223
    %v225 = vrot.slane %v224, 1
    %v226 = vadd.f32 %v224, %v225
    %v227 = vsel %vm184, %v182, 0.0
    %v228 = vrot.slane %v227, 4
    %v229 = vadd.f32 %v227, %v228
    %v230 = vrot.slane %v229, 2
    %v231 = vadd.f32 %v229, %v230
    %v232 = vrot.slane %v231, 1
    %v233 = vadd.f32 %v231, %v232
    %v234 = vsel %vm184, %v183, 0.0
    %v235 = vrot.slane %v234, 4
    %v236 = vadd.f32 %v234, %v235
    %v237 = vrot.slane %v236, 2
    %v238 = vadd.f32 %v236, %v237
    %v239 = vrot.slane %v238, 1
    %v240 = vadd.f32 %v238, %v239
    %v241 = vpack.c.bf16 %v191, %v191
    %v242 = vpack.c.bf16 %v198, %v198
    %v243 = vpack.c.bf16 %v205, %v205
    %v244 = vpack.c.bf16 %v212, %v212
    %v245 = vpack.c.bf16 %v219, %v219
    %v246 = vpack.c.bf16 %v226, %v226
    %v247 = vpack.c.bf16 %v233, %v233
    %v248 = vpack.c.bf16 %v240, %v240
    %v249 = vld [vmem:[%s4] sm:$0xf]
    %v250 = vld [vmem:[%s4 + $0x4] sm:$0xf]
    %v251 = vld [vmem:[%s4 + $0x8] sm:$0xf]
    %v252 = vld [vmem:[%s4 + $0xc] sm:$0xf]
    %v253 = vld [vmem:[%s4 + $0x10] sm:$0xf]
    %v254 = vld [vmem:[%s4 + $0x14] sm:$0xf]
    %v255 = vld [vmem:[%s4 + $0x18] sm:$0xf]
    %v256 = vld [vmem:[%s4 + $0x1c] sm:$0xf]
    %v265 = vunpack.c.l.b16 %v241
    %v266 = vunpack.c.l.b16 %v242
    %v267 = vunpack.c.l.b16 %v243
    %v268 = vunpack.c.l.b16 %v244
    %v269 = vunpack.c.l.b16 %v245
    %v270 = vunpack.c.l.b16 %v246
    %v271 = vunpack.c.l.b16 %v247
    %v272 = vunpack.c.l.b16 %v248
    %vm273 = vcmask 1041409
    %v274 = vsel %vm273, %v266, %v265
    %vm275 = vcmask 1042434
    %v276 = vsel %vm275, %v267, %v274
    %vm277 = vcmask 1043459
    %v278 = vsel %vm277, %v268, %v276
    %vm279 = vcmask 1044484
    %v280 = vsel %vm279, %v269, %v278
    %vm281 = vcmask 1045509
    %v282 = vsel %vm281, %v270, %v280
    %vm283 = vcmask 1046534
    %v284 = vsel %vm283, %v271, %v282
    %vm285 = vcmask 1047559
    %v286 = vsel %vm285, %v272, %v284
    %v287 = vpack.c.b16 %v286, %v286
    %v296 = vunpack.c.l.b16 %v249
    %v297 = vunpack.c.l.b16 %v250
    %v298 = vunpack.c.l.b16 %v251
    %v299 = vunpack.c.l.b16 %v252
    %v300 = vunpack.c.l.b16 %v253
    %v301 = vunpack.c.l.b16 %v254
    %v302 = vunpack.c.l.b16 %v255
    %v303 = vunpack.c.l.b16 %v256
    %v304 = vpack.c.b16 %v297, %v296
    %v305 = vpack.c.b16 %v299, %v298
    %v306 = vpack.c.b16 %v301, %v300
    %v307 = vpack.c.b16 %v303, %v302
    %v313 = vsel %vm184, %v287, 0
    %315 = vmatpush.bf16.msra.mxu0 0
    %316 = vmatpush.bf16.msra.mxu0 0
    %317 = vmatpush.bf16.msra.mxu0 0
    %318 = vmatpush.bf16.msra.mxu0 0
    %319 = vmatpush.bf16.msra.mxu0 %v307
    %320 = vmatpush.bf16.msra.mxu0 %v306
    %321 = vmatpush.bf16.msra.mxu0 %v305
    %322 = vmatpush.bf16.msra.mxu0 %v304
    %323 = vmatmul.bf16.gmra.mxu0 %v313
    %v324 = vpop.f32.mrf.mxu0
    %v325 = vadd.f32 0.0, %v324
    %v326 = vpop.f32.mrf.mxu0
    %327 = vdwg.mxu0
    %vm328 = vcmask 64512
    %v329 = vsel %vm328, %v53, 0.0
    %330 = vadd.xlane.f32.xlu0 %v329
    %v331 = vpop.xlane.xlu0 %330
    %v332 = vmax.f32 %v331, 1e-06
    %v333 = vrcp.pop %v332
    %v334 = vmul.f32 %v325, %v333
    %v335 = vld [vmem:[%s2] sm:$0xff]
    %v336 = vld [vmem:[%s3] sm:$0xff]
    %v337 = vperm.slane %v335, 0
    %v338 = vlaneseq
    %v339 = vshrl.u32 %v338, 7
    %341 = vset.pattern.permute.xlu0 %v339
    %342 = vperm.xlu0 %341, %v337
    %v343 = vpop.permute.xlu0 %342
    %v344 = vlaneseq
    %v345 = vshrl.u32 %v344, 7
    %v346 = vadd.s32 %v345, 8
    %347 = vset.pattern.permute.xlu0 %v346
    %348 = vperm.xlu0 %347, %v337
    %v349 = vpop.permute.xlu0 %348
    %v350 = vlaneseq
    %v351 = vshrl.u32 %v350, 7
    %v352 = vadd.s32 %v351, 16
    %353 = vset.pattern.permute.xlu0 %v352
    %354 = vperm.xlu0 %353, %v337
    %v355 = vpop.permute.xlu0 %354
    %v356 = vlaneseq
    %v357 = vshrl.u32 %v356, 7
    %v358 = vadd.s32 %v357, 24
    %359 = vset.pattern.permute.xlu0 %v358
    %360 = vperm.xlu0 %359, %v337
    %v361 = vpop.permute.xlu0 %360
    %v362 = vperm.slane %v335, 1
    %v363 = vlaneseq
    %v364 = vshrl.u32 %v363, 7
    %366 = vset.pattern.permute.xlu0 %v364
    %367 = vperm.xlu0 %366, %v362
    %v368 = vpop.permute.xlu0 %367
    %v369 = vlaneseq
    %v370 = vshrl.u32 %v369, 7
    %v371 = vadd.s32 %v370, 8
    %372 = vset.pattern.permute.xlu0 %v371
    %373 = vperm.xlu0 %372, %v362
    %v374 = vpop.permute.xlu0 %373
    %v375 = vlaneseq
    %v376 = vshrl.u32 %v375, 7
    %v377 = vadd.s32 %v376, 16
    %378 = vset.pattern.permute.xlu0 %v377
    %379 = vperm.xlu0 %378, %v362
    %v380 = vpop.permute.xlu0 %379
    %v381 = vlaneseq
    %v382 = vshrl.u32 %v381, 7
    %v383 = vadd.s32 %v382, 24
    %384 = vset.pattern.permute.xlu0 %v383
    %385 = vperm.xlu0 %384, %v362
    %v386 = vpop.permute.xlu0 %385
    %v387 = vperm.slane %v335, 2
    %v388 = vlaneseq
    %v389 = vshrl.u32 %v388, 7
    %391 = vset.pattern.permute.xlu0 %v389
    %392 = vperm.xlu0 %391, %v387
    %v393 = vpop.permute.xlu0 %392
    %v394 = vlaneseq
    %v395 = vshrl.u32 %v394, 7
    %v396 = vadd.s32 %v395, 8
    %397 = vset.pattern.permute.xlu0 %v396
    %398 = vperm.xlu0 %397, %v387
    %v399 = vpop.permute.xlu0 %398
    %v400 = vlaneseq
    %v401 = vshrl.u32 %v400, 7
    %v402 = vadd.s32 %v401, 16
    %403 = vset.pattern.permute.xlu0 %v402
    %404 = vperm.xlu0 %403, %v387
    %v405 = vpop.permute.xlu0 %404
    %v406 = vlaneseq
    %v407 = vshrl.u32 %v406, 7
    %v408 = vadd.s32 %v407, 24
    %409 = vset.pattern.permute.xlu0 %v408
    %410 = vperm.xlu0 %409, %v387
    %v411 = vpop.permute.xlu0 %410
    %v412 = vperm.slane %v335, 3
    %v413 = vlaneseq
    %v414 = vshrl.u32 %v413, 7
    %416 = vset.pattern.permute.xlu0 %v414
    %417 = vperm.xlu0 %416, %v412
    %v418 = vpop.permute.xlu0 %417
    %v419 = vlaneseq
    %v420 = vshrl.u32 %v419, 7
    %v421 = vadd.s32 %v420, 8
    %422 = vset.pattern.permute.xlu0 %v421
    %423 = vperm.xlu0 %422, %v412
    %v424 = vpop.permute.xlu0 %423
    %v425 = vlaneseq
    %v426 = vshrl.u32 %v425, 7
    %v427 = vadd.s32 %v426, 16
    %428 = vset.pattern.permute.xlu0 %v427
    %429 = vperm.xlu0 %428, %v412
    %v430 = vpop.permute.xlu0 %429
    %v431 = vlaneseq
    %v432 = vshrl.u32 %v431, 7
    %v433 = vadd.s32 %v432, 24
    %434 = vset.pattern.permute.xlu0 %v433
    %435 = vperm.xlu0 %434, %v412
    %v436 = vpop.permute.xlu0 %435
    %v437 = vperm.slane %v335, 4
    %v438 = vlaneseq
    %v439 = vshrl.u32 %v438, 7
    %441 = vset.pattern.permute.xlu0 %v439
    %442 = vperm.xlu0 %441, %v437
    %v443 = vpop.permute.xlu0 %442
    %v444 = vlaneseq
    %v445 = vshrl.u32 %v444, 7
    %v446 = vadd.s32 %v445, 8
    %447 = vset.pattern.permute.xlu0 %v446
    %448 = vperm.xlu0 %447, %v437
    %v449 = vpop.permute.xlu0 %448
    %v450 = vlaneseq
    %v451 = vshrl.u32 %v450, 7
    %v452 = vadd.s32 %v451, 16
    %453 = vset.pattern.permute.xlu0 %v452
    %454 = vperm.xlu0 %453, %v437
    %v455 = vpop.permute.xlu0 %454
    %v456 = vlaneseq
    %v457 = vshrl.u32 %v456, 7
    %v458 = vadd.s32 %v457, 24
    %459 = vset.pattern.permute.xlu0 %v458
    %460 = vperm.xlu0 %459, %v437
    %v461 = vpop.permute.xlu0 %460
    %v462 = vperm.slane %v335, 5
    %v463 = vlaneseq
    %v464 = vshrl.u32 %v463, 7
    %466 = vset.pattern.permute.xlu0 %v464
    %467 = vperm.xlu0 %466, %v462
    %v468 = vpop.permute.xlu0 %467
    %v469 = vlaneseq
    %v470 = vshrl.u32 %v469, 7
    %v471 = vadd.s32 %v470, 8
    %472 = vset.pattern.permute.xlu0 %v471
    %473 = vperm.xlu0 %472, %v462
    %v474 = vpop.permute.xlu0 %473
    %v475 = vlaneseq
    %v476 = vshrl.u32 %v475, 7
    %v477 = vadd.s32 %v476, 16
    %478 = vset.pattern.permute.xlu0 %v477
    %479 = vperm.xlu0 %478, %v462
    %v480 = vpop.permute.xlu0 %479
    %v481 = vlaneseq
    %v482 = vshrl.u32 %v481, 7
    %v483 = vadd.s32 %v482, 24
    %484 = vset.pattern.permute.xlu0 %v483
    %485 = vperm.xlu0 %484, %v462
    %v486 = vpop.permute.xlu0 %485
    %v487 = vperm.slane %v335, 6
    %v488 = vlaneseq
    %v489 = vshrl.u32 %v488, 7
    %491 = vset.pattern.permute.xlu0 %v489
    %492 = vperm.xlu0 %491, %v487
    %v493 = vpop.permute.xlu0 %492
    %v494 = vlaneseq
    %v495 = vshrl.u32 %v494, 7
    %v496 = vadd.s32 %v495, 8
    %497 = vset.pattern.permute.xlu0 %v496
    %498 = vperm.xlu0 %497, %v487
    %v499 = vpop.permute.xlu0 %498
    %v500 = vlaneseq
    %v501 = vshrl.u32 %v500, 7
    %v502 = vadd.s32 %v501, 16
    %503 = vset.pattern.permute.xlu0 %v502
    %504 = vperm.xlu0 %503, %v487
    %v505 = vpop.permute.xlu0 %504
    %v506 = vlaneseq
    %v507 = vshrl.u32 %v506, 7
    %v508 = vadd.s32 %v507, 24
    %509 = vset.pattern.permute.xlu0 %v508
    %510 = vperm.xlu0 %509, %v487
    %v511 = vpop.permute.xlu0 %510
    %v512 = vperm.slane %v335, 7
    %v513 = vlaneseq
    %v514 = vshrl.u32 %v513, 7
    %516 = vset.pattern.permute.xlu0 %v514
    %517 = vperm.xlu0 %516, %v512
    %v518 = vpop.permute.xlu0 %517
    %v519 = vlaneseq
    %v520 = vshrl.u32 %v519, 7
    %v521 = vadd.s32 %v520, 8
    %522 = vset.pattern.permute.xlu0 %v521
    %523 = vperm.xlu0 %522, %v512
    %v524 = vpop.permute.xlu0 %523
    %v525 = vlaneseq
    %v526 = vshrl.u32 %v525, 7
    %v527 = vadd.s32 %v526, 16
    %528 = vset.pattern.permute.xlu0 %v527
    %529 = vperm.xlu0 %528, %v512
    %v530 = vpop.permute.xlu0 %529
    %v531 = vlaneseq
    %v532 = vshrl.u32 %v531, 7
    %v533 = vadd.s32 %v532, 24
    %534 = vset.pattern.permute.xlu0 %v533
    %535 = vperm.xlu0 %534, %v512
    %v536 = vpop.permute.xlu0 %535
    %vm537 = vcmp.eq.s32.totalorder %v55, %v343
    %vm538 = vcmp.eq.s32.totalorder %v55, %v349
    %vm539 = vcmp.eq.s32.totalorder %v55, %v355
    %vm540 = vcmp.eq.s32.totalorder %v55, %v361
    %vm541 = vcmp.eq.s32.totalorder %v55, %v368
    %vm542 = vcmp.eq.s32.totalorder %v55, %v374
    %vm543 = vcmp.eq.s32.totalorder %v55, %v380
    %vm544 = vcmp.eq.s32.totalorder %v55, %v386
    %vm545 = vcmp.eq.s32.totalorder %v55, %v393
    %vm546 = vcmp.eq.s32.totalorder %v55, %v399
    %vm547 = vcmp.eq.s32.totalorder %v55, %v405
    %vm548 = vcmp.eq.s32.totalorder %v55, %v411
    %vm549 = vcmp.eq.s32.totalorder %v55, %v418
    %vm550 = vcmp.eq.s32.totalorder %v55, %v424
    %vm551 = vcmp.eq.s32.totalorder %v55, %v430
    %vm552 = vcmp.eq.s32.totalorder %v55, %v436
    %vm553 = vcmp.eq.s32.totalorder %v55, %v443
    %vm554 = vcmp.eq.s32.totalorder %v55, %v449
    %vm555 = vcmp.eq.s32.totalorder %v55, %v455
    %vm556 = vcmp.eq.s32.totalorder %v55, %v461
    %vm557 = vcmp.eq.s32.totalorder %v55, %v468
    %vm558 = vcmp.eq.s32.totalorder %v55, %v474
    %vm559 = vcmp.eq.s32.totalorder %v55, %v480
    %vm560 = vcmp.eq.s32.totalorder %v55, %v486
    %vm561 = vcmp.eq.s32.totalorder %v55, %v493
    %vm562 = vcmp.eq.s32.totalorder %v55, %v499
    %vm563 = vcmp.eq.s32.totalorder %v55, %v505
    %vm564 = vcmp.eq.s32.totalorder %v55, %v511
    %vm565 = vcmp.eq.s32.totalorder %v55, %v518
    %vm566 = vcmp.eq.s32.totalorder %v55, %v524
    %vm567 = vcmp.eq.s32.totalorder %v55, %v530
    %vm568 = vcmp.eq.s32.totalorder %v55, %v536
    %v569 = vperm.slane %v336, 0
    %v570 = vlaneseq
    %v571 = vshrl.u32 %v570, 7
    %573 = vset.pattern.permute.xlu0 %v571
    %574 = vperm.xlu0 %573, %v569
    %v575 = vpop.permute.xlu0 %574
    %v576 = vlaneseq
    %v577 = vshrl.u32 %v576, 7
    %v578 = vadd.s32 %v577, 8
    %579 = vset.pattern.permute.xlu0 %v578
    %580 = vperm.xlu0 %579, %v569
    %v581 = vpop.permute.xlu0 %580
    %v582 = vlaneseq
    %v583 = vshrl.u32 %v582, 7
    %v584 = vadd.s32 %v583, 16
    %585 = vset.pattern.permute.xlu0 %v584
    %586 = vperm.xlu0 %585, %v569
    %v587 = vpop.permute.xlu0 %586
    %v588 = vlaneseq
    %v589 = vshrl.u32 %v588, 7
    %v590 = vadd.s32 %v589, 24
    %591 = vset.pattern.permute.xlu0 %v590
    %592 = vperm.xlu0 %591, %v569
    %v593 = vpop.permute.xlu0 %592
    %v594 = vperm.slane %v336, 1
    %v595 = vlaneseq
    %v596 = vshrl.u32 %v595, 7
    %598 = vset.pattern.permute.xlu0 %v596
    %599 = vperm.xlu0 %598, %v594
    %v600 = vpop.permute.xlu0 %599
    %v601 = vlaneseq
    %v602 = vshrl.u32 %v601, 7
    %v603 = vadd.s32 %v602, 8
    %604 = vset.pattern.permute.xlu0 %v603
    %605 = vperm.xlu0 %604, %v594
    %v606 = vpop.permute.xlu0 %605
    %v607 = vlaneseq
    %v608 = vshrl.u32 %v607, 7
    %v609 = vadd.s32 %v608, 16
    %610 = vset.pattern.permute.xlu0 %v609
    %611 = vperm.xlu0 %610, %v594
    %v612 = vpop.permute.xlu0 %611
    %v613 = vlaneseq
    %v614 = vshrl.u32 %v613, 7
    %v615 = vadd.s32 %v614, 24
    %616 = vset.pattern.permute.xlu0 %v615
    %617 = vperm.xlu0 %616, %v594
    %v618 = vpop.permute.xlu0 %617
    %v619 = vperm.slane %v336, 2
    %v620 = vlaneseq
    %v621 = vshrl.u32 %v620, 7
    %623 = vset.pattern.permute.xlu0 %v621
    %624 = vperm.xlu0 %623, %v619
    %v625 = vpop.permute.xlu0 %624
    %v626 = vlaneseq
    %v627 = vshrl.u32 %v626, 7
    %v628 = vadd.s32 %v627, 8
    %629 = vset.pattern.permute.xlu0 %v628
    %630 = vperm.xlu0 %629, %v619
    %v631 = vpop.permute.xlu0 %630
    %v632 = vlaneseq
    %v633 = vshrl.u32 %v632, 7
    %v634 = vadd.s32 %v633, 16
    %635 = vset.pattern.permute.xlu0 %v634
    %636 = vperm.xlu0 %635, %v619
    %v637 = vpop.permute.xlu0 %636
    %v638 = vlaneseq
    %v639 = vshrl.u32 %v638, 7
    %v640 = vadd.s32 %v639, 24
    %641 = vset.pattern.permute.xlu0 %v640
    %642 = vperm.xlu0 %641, %v619
    %v643 = vpop.permute.xlu0 %642
    %v644 = vperm.slane %v336, 3
    %v645 = vlaneseq
    %v646 = vshrl.u32 %v645, 7
    %648 = vset.pattern.permute.xlu0 %v646
    %649 = vperm.xlu0 %648, %v644
    %v650 = vpop.permute.xlu0 %649
    %v651 = vlaneseq
    %v652 = vshrl.u32 %v651, 7
    %v653 = vadd.s32 %v652, 8
    %654 = vset.pattern.permute.xlu0 %v653
    %655 = vperm.xlu0 %654, %v644
    %v656 = vpop.permute.xlu0 %655
    %v657 = vlaneseq
    %v658 = vshrl.u32 %v657, 7
    %v659 = vadd.s32 %v658, 16
    %660 = vset.pattern.permute.xlu0 %v659
    %661 = vperm.xlu0 %660, %v644
    %v662 = vpop.permute.xlu0 %661
    %v663 = vlaneseq
    %v664 = vshrl.u32 %v663, 7
    %v665 = vadd.s32 %v664, 24
    %666 = vset.pattern.permute.xlu0 %v665
    %667 = vperm.xlu0 %666, %v644
    %v668 = vpop.permute.xlu0 %667
    %v669 = vperm.slane %v336, 4
    %v670 = vlaneseq
    %v671 = vshrl.u32 %v670, 7
    %673 = vset.pattern.permute.xlu0 %v671
    %674 = vperm.xlu0 %673, %v669
    %v675 = vpop.permute.xlu0 %674
    %v676 = vlaneseq
    %v677 = vshrl.u32 %v676, 7
    %v678 = vadd.s32 %v677, 8
    %679 = vset.pattern.permute.xlu0 %v678
    %680 = vperm.xlu0 %679, %v669
    %v681 = vpop.permute.xlu0 %680
    %v682 = vlaneseq
    %v683 = vshrl.u32 %v682, 7
    %v684 = vadd.s32 %v683, 16
    %685 = vset.pattern.permute.xlu0 %v684
    %686 = vperm.xlu0 %685, %v669
    %v687 = vpop.permute.xlu0 %686
    %v688 = vlaneseq
    %v689 = vshrl.u32 %v688, 7
    %v690 = vadd.s32 %v689, 24
    %691 = vset.pattern.permute.xlu0 %v690
    %692 = vperm.xlu0 %691, %v669
    %v693 = vpop.permute.xlu0 %692
    %v694 = vperm.slane %v336, 5
    %v695 = vlaneseq
    %v696 = vshrl.u32 %v695, 7
    %698 = vset.pattern.permute.xlu0 %v696
    %699 = vperm.xlu0 %698, %v694
    %v700 = vpop.permute.xlu0 %699
    %v701 = vlaneseq
    %v702 = vshrl.u32 %v701, 7
    %v703 = vadd.s32 %v702, 8
    %704 = vset.pattern.permute.xlu0 %v703
    %705 = vperm.xlu0 %704, %v694
    %v706 = vpop.permute.xlu0 %705
    %v707 = vlaneseq
    %v708 = vshrl.u32 %v707, 7
    %v709 = vadd.s32 %v708, 16
    %710 = vset.pattern.permute.xlu0 %v709
    %711 = vperm.xlu0 %710, %v694
    %v712 = vpop.permute.xlu0 %711
    %v713 = vlaneseq
    %v714 = vshrl.u32 %v713, 7
    %v715 = vadd.s32 %v714, 24
    %716 = vset.pattern.permute.xlu0 %v715
    %717 = vperm.xlu0 %716, %v694
    %v718 = vpop.permute.xlu0 %717
    %v719 = vperm.slane %v336, 6
    %v720 = vlaneseq
    %v721 = vshrl.u32 %v720, 7
    %723 = vset.pattern.permute.xlu0 %v721
    %724 = vperm.xlu0 %723, %v719
    %v725 = vpop.permute.xlu0 %724
    %v726 = vlaneseq
    %v727 = vshrl.u32 %v726, 7
    %v728 = vadd.s32 %v727, 8
    %729 = vset.pattern.permute.xlu0 %v728
    %730 = vperm.xlu0 %729, %v719
    %v731 = vpop.permute.xlu0 %730
    %v732 = vlaneseq
    %v733 = vshrl.u32 %v732, 7
    %v734 = vadd.s32 %v733, 16
    %735 = vset.pattern.permute.xlu0 %v734
    %736 = vperm.xlu0 %735, %v719
    %v737 = vpop.permute.xlu0 %736
    %v738 = vlaneseq
    %v739 = vshrl.u32 %v738, 7
    %v740 = vadd.s32 %v739, 24
    %741 = vset.pattern.permute.xlu0 %v740
    %742 = vperm.xlu0 %741, %v719
    %v743 = vpop.permute.xlu0 %742
    %v744 = vperm.slane %v336, 7
    %v745 = vlaneseq
    %v746 = vshrl.u32 %v745, 7
    %748 = vset.pattern.permute.xlu0 %v746
    %749 = vperm.xlu0 %748, %v744
    %v750 = vpop.permute.xlu0 %749
    %v751 = vlaneseq
    %v752 = vshrl.u32 %v751, 7
    %v753 = vadd.s32 %v752, 8
    %754 = vset.pattern.permute.xlu0 %v753
    %755 = vperm.xlu0 %754, %v744
    %v756 = vpop.permute.xlu0 %755
    %v757 = vlaneseq
    %v758 = vshrl.u32 %v757, 7
    %v759 = vadd.s32 %v758, 16
    %760 = vset.pattern.permute.xlu0 %v759
    %761 = vperm.xlu0 %760, %v744
    %v762 = vpop.permute.xlu0 %761
    %v763 = vlaneseq
    %v764 = vshrl.u32 %v763, 7
    %v765 = vadd.s32 %v764, 24
    %766 = vset.pattern.permute.xlu0 %v765
    %767 = vperm.xlu0 %766, %v744
    %v768 = vpop.permute.xlu0 %767
    %v769 = vsel %vm537, %v575, 0.0
    %v770 = vsel %vm538, %v581, 0.0
    %v771 = vsel %vm539, %v587, 0.0
    %v772 = vsel %vm540, %v593, 0.0
    %v773 = vsel %vm541, %v600, 0.0
    %v774 = vsel %vm542, %v606, 0.0
    %v775 = vsel %vm543, %v612, 0.0
    %v776 = vsel %vm544, %v618, 0.0
    %v777 = vsel %vm545, %v625, 0.0
    %v778 = vsel %vm546, %v631, 0.0
    %v779 = vsel %vm547, %v637, 0.0
    %v780 = vsel %vm548, %v643, 0.0
    %v781 = vsel %vm549, %v650, 0.0
    %v782 = vsel %vm550, %v656, 0.0
    %v783 = vsel %vm551, %v662, 0.0
    %v784 = vsel %vm552, %v668, 0.0
    %v785 = vsel %vm553, %v675, 0.0
    %v786 = vsel %vm554, %v681, 0.0
    %v787 = vsel %vm555, %v687, 0.0
    %v788 = vsel %vm556, %v693, 0.0
    %v789 = vsel %vm557, %v700, 0.0
    %v790 = vsel %vm558, %v706, 0.0
    %v791 = vsel %vm559, %v712, 0.0
    %v792 = vsel %vm560, %v718, 0.0
    %v793 = vsel %vm561, %v725, 0.0
    %v794 = vsel %vm562, %v731, 0.0
    %v795 = vsel %vm563, %v737, 0.0
    %v796 = vsel %vm564, %v743, 0.0
    %v797 = vsel %vm565, %v750, 0.0
    %v798 = vsel %vm566, %v756, 0.0
    %v799 = vsel %vm567, %v762, 0.0
    %v800 = vsel %vm568, %v768, 0.0
    %v801 = vadd.f32 %v769, %v770
    %v802 = vadd.f32 %v801, %v771
    %v803 = vadd.f32 %v802, %v772
    %v804 = vrot.slane %v803, 4
    %v805 = vadd.f32 %v803, %v804
    %v806 = vrot.slane %v805, 2
    %v807 = vadd.f32 %v805, %v806
    %v808 = vrot.slane %v807, 1
    %v809 = vadd.f32 %v807, %v808
    %v810 = vadd.f32 %v773, %v774
    %v811 = vadd.f32 %v810, %v775
    %v812 = vadd.f32 %v811, %v776
    %v813 = vrot.slane %v812, 4
    %v814 = vadd.f32 %v812, %v813
    %v815 = vrot.slane %v814, 2
    %v816 = vadd.f32 %v814, %v815
    %v817 = vrot.slane %v816, 1
    %v818 = vadd.f32 %v816, %v817
    %v819 = vadd.f32 %v777, %v778
    %v820 = vadd.f32 %v819, %v779
    %v821 = vadd.f32 %v820, %v780
    %v822 = vrot.slane %v821, 4
    %v823 = vadd.f32 %v821, %v822
    %v824 = vrot.slane %v823, 2
    %v825 = vadd.f32 %v823, %v824
    %v826 = vrot.slane %v825, 1
    %v827 = vadd.f32 %v825, %v826
    %v828 = vadd.f32 %v781, %v782
    %v829 = vadd.f32 %v828, %v783
    %v830 = vadd.f32 %v829, %v784
    %v831 = vrot.slane %v830, 4
    %v832 = vadd.f32 %v830, %v831
    %v833 = vrot.slane %v832, 2
    %v834 = vadd.f32 %v832, %v833
    %v835 = vrot.slane %v834, 1
    %v836 = vadd.f32 %v834, %v835
    %v837 = vadd.f32 %v785, %v786
    %v838 = vadd.f32 %v837, %v787
    %v839 = vadd.f32 %v838, %v788
    %v840 = vrot.slane %v839, 4
    %v841 = vadd.f32 %v839, %v840
    %v842 = vrot.slane %v841, 2
    %v843 = vadd.f32 %v841, %v842
    %v844 = vrot.slane %v843, 1
    %v845 = vadd.f32 %v843, %v844
    %v846 = vadd.f32 %v789, %v790
    %v847 = vadd.f32 %v846, %v791
    %v848 = vadd.f32 %v847, %v792
    %v849 = vrot.slane %v848, 4
    %v850 = vadd.f32 %v848, %v849
    %v851 = vrot.slane %v850, 2
    %v852 = vadd.f32 %v850, %v851
    %v853 = vrot.slane %v852, 1
    %v854 = vadd.f32 %v852, %v853
    %v855 = vadd.f32 %v793, %v794
    %v856 = vadd.f32 %v855, %v795
    %v857 = vadd.f32 %v856, %v796
    %v858 = vrot.slane %v857, 4
    %v859 = vadd.f32 %v857, %v858
    %v860 = vrot.slane %v859, 2
    %v861 = vadd.f32 %v859, %v860
    %v862 = vrot.slane %v861, 1
    %v863 = vadd.f32 %v861, %v862
    %v864 = vadd.f32 %v797, %v798
    %v865 = vadd.f32 %v864, %v799
    %v866 = vadd.f32 %v865, %v800
    %v867 = vrot.slane %v866, 4
    %v868 = vadd.f32 %v866, %v867
    %v869 = vrot.slane %v868, 2
    %v870 = vadd.f32 %v868, %v869
    %v871 = vrot.slane %v870, 1
    %v872 = vadd.f32 %v870, %v871
    %v873 = vpack.c.bf16 %v809, %v809
    %v874 = vpack.c.bf16 %v818, %v818
    %v875 = vpack.c.bf16 %v827, %v827
    %v876 = vpack.c.bf16 %v836, %v836
    %v877 = vpack.c.bf16 %v845, %v845
    %v878 = vpack.c.bf16 %v854, %v854
    %v879 = vpack.c.bf16 %v863, %v863
    %v880 = vpack.c.bf16 %v872, %v872
    %v881 = vld [vmem:[%s5] sm:$0xf]
    %v882 = vld [vmem:[%s5 + $0x4] sm:$0xf]
    %v883 = vld [vmem:[%s5 + $0x8] sm:$0xf]
    %v884 = vld [vmem:[%s5 + $0xc] sm:$0xf]
    %v885 = vld [vmem:[%s5 + $0x10] sm:$0xf]
    %v886 = vld [vmem:[%s5 + $0x14] sm:$0xf]
    %v887 = vld [vmem:[%s5 + $0x18] sm:$0xf]
    %v888 = vld [vmem:[%s5 + $0x1c] sm:$0xf]
    %v889 = vld [vmem:[%s5 + $0x20] sm:$0xf]
    %v890 = vld [vmem:[%s5 + $0x24] sm:$0xf]
    %v891 = vld [vmem:[%s5 + $0x28] sm:$0xf]
    %v892 = vld [vmem:[%s5 + $0x2c] sm:$0xf]
    %v893 = vld [vmem:[%s5 + $0x30] sm:$0xf]
    %v894 = vld [vmem:[%s5 + $0x34] sm:$0xf]
    %v895 = vld [vmem:[%s5 + $0x38] sm:$0xf]
    %v896 = vld [vmem:[%s5 + $0x3c] sm:$0xf]
    %v905 = vunpack.c.l.b16 %v873
    %v906 = vunpack.c.l.b16 %v874
    %v907 = vunpack.c.l.b16 %v875
    %v908 = vunpack.c.l.b16 %v876
    %v909 = vunpack.c.l.b16 %v877
    %v910 = vunpack.c.l.b16 %v878
    %v911 = vunpack.c.l.b16 %v879
    %v912 = vunpack.c.l.b16 %v880
    %v913 = vsel %vm273, %v906, %v905
    %v914 = vsel %vm275, %v907, %v913
    %v915 = vsel %vm277, %v908, %v914
    %v916 = vsel %vm279, %v909, %v915
    %v917 = vsel %vm281, %v910, %v916
    %v918 = vsel %vm283, %v911, %v917
    %v919 = vsel %vm285, %v912, %v918
    %v920 = vpack.c.b16 %v919, %v919
    %v938 = vunpack.c.l.b16 %v881
    %v939 = vunpack.c.l.b16 %v882
    %v940 = vunpack.c.l.b16 %v883
    %v941 = vunpack.c.l.b16 %v884
    %v942 = vunpack.c.l.b16 %v885
    %v943 = vunpack.c.l.b16 %v886
    %v944 = vunpack.c.l.b16 %v887
    %v945 = vunpack.c.l.b16 %v888
    %v946 = vunpack.c.l.b16 %v889
    %v947 = vunpack.c.l.b16 %v890
    %v948 = vunpack.c.l.b16 %v891
    %v949 = vunpack.c.l.b16 %v892
    %v950 = vunpack.c.l.b16 %v893
    %v951 = vunpack.c.l.b16 %v894
    %v952 = vunpack.c.l.b16 %v895
    %v953 = vunpack.c.l.b16 %v896
    %v954 = vpack.c.b16 %v939, %v938
    %v955 = vpack.c.b16 %v941, %v940
    %v956 = vpack.c.b16 %v943, %v942
    %v957 = vpack.c.b16 %v945, %v944
    %v958 = vpack.c.b16 %v947, %v946
    %v959 = vpack.c.b16 %v949, %v948
    %v960 = vpack.c.b16 %v951, %v950
    %v961 = vpack.c.b16 %v953, %v952
    %970 = vmatpush.bf16.msra.mxu0 %v961
    %971 = vmatpush.bf16.msra.mxu0 %v960
    %972 = vmatpush.bf16.msra.mxu0 %v959
    %973 = vmatpush.bf16.msra.mxu0 %v958
    %974 = vmatpush.bf16.msra.mxu0 %v957
    %975 = vmatpush.bf16.msra.mxu0 %v956
    %976 = vmatpush.bf16.msra.mxu0 %v955
    %977 = vmatpush.bf16.msra.mxu0 %v954
    %978 = vmatmul.bf16.gmra.mxu0 %v920
    %v979 = vpop.f32.mrf.mxu0
    %v980 = vadd.f32 0.0, %v979
    %v981 = vpop.f32.mrf.mxu0
    %982 = vdwg.mxu0
    %vm983 = vcmask 261120
    %v984 = vsel %vm983, %v336, 0.0
    %985 = vadd.xlane.f32.xlu0 %v984
    %v986 = vpop.xlane.xlu0 %985
    %v987 = vmax.f32 %v986, 1e-06
    %v988 = vrcp.pop %v987
    %v989 = vmul.f32 %v980, %v988
    %v990 = vpack.c.bf16 %v334, %v334
    %v991 = vld [vmem:[%s6] sm:$0xf]
    %v992 = vld [vmem:[%s6 + $0x4] sm:$0xf]
    %v993 = vld [vmem:[%s6 + $0x8] sm:$0xf]
    %v994 = vld [vmem:[%s6 + $0xc] sm:$0xf]
    %v995 = vpack.c.bf16 %v989, %v989
    %v996 = vld [vmem:[%s7] sm:$0xf]
    %v997 = vld [vmem:[%s7 + $0x4] sm:$0xf]
    %v998 = vld [vmem:[%s7 + $0x8] sm:$0xf]
    %v999 = vld [vmem:[%s7 + $0xc] sm:$0xf]
    %v1004 = vunpack.c.l.b16 %v996
    %v1005 = vunpack.c.l.b16 %v997
    %v1006 = vunpack.c.l.b16 %v998
    %v1007 = vunpack.c.l.b16 %v999
    %v1008 = vpack.c.b16 %v1005, %v1004
    %v1009 = vpack.c.b16 %v1007, %v1006
    %v1013 = vsel %vm983, %v995, 0
    %1015 = vmatpush.bf16.msra.mxu0 0
    %1016 = vmatpush.bf16.msra.mxu0 0
    %1017 = vmatpush.bf16.msra.mxu0 0
    %1018 = vmatpush.bf16.msra.mxu0 0
    %1019 = vmatpush.bf16.msra.mxu0 0
    %1020 = vmatpush.bf16.msra.mxu0 0
    %1021 = vmatpush.bf16.msra.mxu0 %v1009
    %1022 = vmatpush.bf16.msra.mxu0 %v1008
    %1023 = vmatmul.bf16.gmra.mxu0 %v1013
    %v1024 = vpop.f32.mrf.mxu0
    %v1025 = vadd.f32 0.0, %v1024
    %v1026 = vpop.f32.mrf.mxu0
    %1027 = vdwg.mxu0
    %v1032 = vunpack.c.l.b16 %v991
    %v1033 = vunpack.c.l.b16 %v992
    %v1034 = vunpack.c.l.b16 %v993
    %v1035 = vunpack.c.l.b16 %v994
    %v1036 = vpack.c.b16 %v1033, %v1032
    %v1037 = vpack.c.b16 %v1035, %v1034
    %v1041 = vsel %vm983, %v990, 0
    %1043 = vmatpush.bf16.msra.mxu0 0
    %1044 = vmatpush.bf16.msra.mxu0 0
    %1045 = vmatpush.bf16.msra.mxu0 0
    %1046 = vmatpush.bf16.msra.mxu0 0
    %1047 = vmatpush.bf16.msra.mxu0 0
    %1048 = vmatpush.bf16.msra.mxu0 0
    %1049 = vmatpush.bf16.msra.mxu0 %v1037
    %1050 = vmatpush.bf16.msra.mxu0 %v1036
    %1051 = vmatmul.bf16.gmra.mxu0 %v1041
    %v1052 = vpop.f32.mrf.mxu0
    %v1053 = vadd.f32 %v1025, %v1052
    %v1054 = vpop.f32.mrf.mxu0
    %1055 = vdwg.mxu0
    %v1056 = vld [vmem:[%s8] sm:$0x1]
    %v1058 = vperm.slane %v1056, 0
    %v1060 = vadd.f32 %v1053, %v1058
    %v1061 = vpack.c.bf16 %v1060, %v1060
    %v1062 = vld [vmem:[%s9] sm:$0xf]
    %v1063 = vld [vmem:[%s9 + $0x4] sm:$0xf]
    %v1064 = vld [vmem:[%s9 + $0x8] sm:$0xf]
    %v1065 = vld [vmem:[%s9 + $0xc] sm:$0xf]
    %v1066 = vld [vmem:[%s10] sm:$0x1]
    %v1068 = vperm.slane %v1066, 0
    %v1074 = vunpack.c.l.b16 %v1062
    %v1075 = vunpack.c.l.b16 %v1063
    %v1076 = vunpack.c.l.b16 %v1064
    %v1077 = vunpack.c.l.b16 %v1065
    %v1078 = vpack.c.b16 %v1075, %v1074
    %v1079 = vpack.c.b16 %v1077, %v1076
    %v1083 = vsel %vm983, %v1061, 0
    %1085 = vmatpush.bf16.msra.mxu0 0
    %1086 = vmatpush.bf16.msra.mxu0 0
    %1087 = vmatpush.bf16.msra.mxu0 0
    %1088 = vmatpush.bf16.msra.mxu0 0
    %1089 = vmatpush.bf16.msra.mxu0 0
    %1090 = vmatpush.bf16.msra.mxu0 0
    %1091 = vmatpush.bf16.msra.mxu0 %v1079
    %1092 = vmatpush.bf16.msra.mxu0 %v1078
    %1093 = vmatmul.bf16.gmra.mxu0 %v1083
    %v1094 = vpop.f32.mrf.mxu0
    %v1095 = vadd.f32 %v1068, %v1094
    %v1096 = vpop.f32.mrf.mxu0
    %1097 = vdwg.mxu0
    %v1098 = vmax.f32 %v1095, 0.0
    %v1099 = vpack.c.bf16 %v1098, %v1098
    %v1100 = vld [vmem:[%s11] sm:$0xf]
    %v1101 = vld [vmem:[%s11 + $0x4] sm:$0xf]
    %v1102 = vld [vmem:[%s11 + $0x8] sm:$0xf]
    %v1103 = vld [vmem:[%s11 + $0xc] sm:$0xf]
    %v1104 = vld [vmem:[%s11 + $0x10] sm:$0xf]
    %v1105 = vld [vmem:[%s11 + $0x14] sm:$0xf]
    %v1106 = vld [vmem:[%s11 + $0x18] sm:$0xf]
    %v1107 = vld [vmem:[%s11 + $0x1c] sm:$0xf]
    %v1108 = vld [vmem:[%s12] sm:$0x1]
    %v1110 = vperm.slane %v1108, 0
    %v1120 = vunpack.c.l.b16 %v1100
    %v1121 = vunpack.c.l.b16 %v1101
    %v1122 = vunpack.c.l.b16 %v1102
    %v1123 = vunpack.c.l.b16 %v1103
    %v1124 = vunpack.c.l.b16 %v1104
    %v1125 = vunpack.c.l.b16 %v1105
    %v1126 = vunpack.c.l.b16 %v1106
    %v1127 = vunpack.c.l.b16 %v1107
    %v1128 = vpack.c.b16 %v1121, %v1120
    %v1129 = vpack.c.b16 %v1123, %v1122
    %v1130 = vpack.c.b16 %v1125, %v1124
    %v1131 = vpack.c.b16 %v1127, %v1126
    %v1137 = vsel %vm184, %v1099, 0
    %1139 = vmatpush.bf16.msra.mxu0 0
    %1140 = vmatpush.bf16.msra.mxu0 0
    %1141 = vmatpush.bf16.msra.mxu0 0
    %1142 = vmatpush.bf16.msra.mxu0 0
    %1143 = vmatpush.bf16.msra.mxu0 %v1131
    %1144 = vmatpush.bf16.msra.mxu0 %v1130
    %1145 = vmatpush.bf16.msra.mxu0 %v1129
    %1146 = vmatpush.bf16.msra.mxu0 %v1128
    %1147 = vmatmul.bf16.gmra.mxu0 %v1137
    %v1148 = vpop.f32.mrf.mxu0
    %v1149 = vadd.f32 %v1110, %v1148
    %v1150 = vpop.f32.mrf.mxu0
    %1151 = vdwg.mxu0
    %v1152 = vmax.f32 %v1149, 0.0
    %v1153 = vpack.c.bf16 %v1152, %v1152
    %v1154 = vld [vmem:[%s13] sm:$0xf]
    %v1155 = vld [vmem:[%s13 + $0x4] sm:$0xf]
    %v1156 = vld [vmem:[%s13 + $0x8] sm:$0xf]
    %v1157 = vld [vmem:[%s13 + $0xc] sm:$0xf]
    %v1158 = vld [vmem:[%s14] sm:$0x1]
    %v1160 = vperm.slane %v1158, 0
    %v1166 = vunpack.c.l.b16 %v1154
    %v1167 = vunpack.c.l.b16 %v1155
    %v1168 = vunpack.c.l.b16 %v1156
    %v1169 = vunpack.c.l.b16 %v1157
    %v1170 = vpack.c.b16 %v1167, %v1166
    %v1171 = vpack.c.b16 %v1169, %v1168
    %v1175 = vsel %vm983, %v1153, 0
    %1177 = vmatpush.bf16.msra.mxu0 0
    %1178 = vmatpush.bf16.msra.mxu0 0
    %1179 = vmatpush.bf16.msra.mxu0 0
    %1180 = vmatpush.bf16.msra.mxu0 0
    %1181 = vmatpush.bf16.msra.mxu0 0
    %1182 = vmatpush.bf16.msra.mxu0 0
    %1183 = vmatpush.bf16.msra.mxu0 %v1171
    %1184 = vmatpush.bf16.msra.mxu0 %v1170
    %1185 = vmatmul.bf16.gmra.mxu0 %v1175
    %v1186 = vpop.f32.mrf.mxu0
    %v1187 = vadd.f32 %v1160, %v1186
    %v1188 = vpop.f32.mrf.mxu0
    %1189 = vdwg.mxu0
    %1190 = vst [vmem:[#allocation2] sm:$0xff] %v1187
    // Predicated region
    $region62: #{tpu_custom_call.1} parent=1 // pred_check
      _
    $region63: #{tpu_custom_call.1} parent=1 // pred_check_branch
      %1192 = sbr.rel (0) target = $region65
    $region64: #{tpu_custom_call.1} parent=1 // pred_region
      %1194 = vsyncadd [#allocation3], 0
      %s1196 = sshll.u32 [#allocation2], 4
      %s1197 = int_to_ptr.vmem [resolvable:$true] %s1196
      %s1198 = sshll.u32 %s15, 4
      %s1199 = int_to_ptr.hbm [resolvable:$true] %s1198
      %1201 = dma.vmem_to_hbm [thread:$0]  %s1197, 128, %s1199, [#allocation3]
    $region65: #{tpu_custom_call.1} parent=1 // pred_fallthru
      _
    // Predicated region
    $region66: #{tpu_custom_call.1} parent=1 // pred_check
      _
    $region67: #{tpu_custom_call.1} parent=1 // pred_check_branch
      %1203 = sbr.rel (0) target = $region69
    $region68: #{tpu_custom_call.1} parent=1 // pred_region
      %1205 = dma.done [#allocation3], 128
    $region69: #{tpu_custom_call.1} parent=1 // pred_fallthru
      _
    %1206 = vsyncpa [#allocation3], 1

</llo_original>
